<compile_context>
chip_gen: v7x
topology: tpu7x:2x2x1
jax: 0.10.0
libtpu: 0.0.40
codegen_flags: <defaults>
</compile_context>

<pallas_src>
import functools

import numpy as np
import jax
import jax.numpy as jnp
from jax.experimental import pallas as pl
from jax.experimental.pallas import tpu as pltpu


# ----------------------------- fused Pallas kernel ---------------------------

def _make_fused_kernel(taps, rows2, s2, batch):
    """Fused DCGAN_D forward.

    taps  : number of (kh2,kw2) taps of the layer-2 conv (16 for a 4x4 kernel)
    rows2 : N * OH2 * OW2 rows of the layer-2 output (= BN reduction length)
    s2    : OH2 * OW2 spatial positions per sample
    batch : N (for the final output.mean(0))
    """
    inv_batch = 1.0 / batch

    def kernel(p1_ref, w1_ref, w2_ref, g_ref, b_ref, w3_ref, o_ref):
        # ---- layer 1: ONE GEMM over all duplicated patch rows ---------------
        y1 = jnp.dot(p1_ref[...], w1_ref[...],
                     preferred_element_type=jnp.float32)       # (taps*rows2, C1)
        y1 = jnp.where(y1 > 0, y1, 0.2 * y1)                   # LeakyReLU(0.2)

        # ---- assemble the layer-2 operand: (rows2, taps*C1) ------------------
        # p1dup rows are tap-major, so tap t's block is the contiguous slice
        # [t*rows2, (t+1)*rows2) with inner order (n, oh2, ow2).  Rows hit by
        # layer-2's zero padding are all-zero (bias-free conv, LeakyReLU(0)=0)
        # and therefore contribute nothing to the K=taps*C1 contraction.
        y1r = jnp.concatenate(
            [y1[t * rows2:(t + 1) * rows2, :] for t in range(taps)], axis=1)

        # ---- layer 2: ONE GEMM, K = taps*C1 (=256) ---------------------------
        acc = jnp.dot(y1r.astype(w2_ref.dtype), w2_ref[...],
                      preferred_element_type=jnp.float32)       # (rows2, C2)

        # ---- BatchNorm (training mode, biased batch stats over (N,H,W)) ------
        # Two-pass variance (no E[x^2]-E[x]^2 cancellation).  Statistics are
        # exact because the whole (rows2, C2) activation lives in this block.
        mean = jnp.mean(acc, axis=0, keepdims=True)
        d = acc - mean
        var = jnp.mean(d * d, axis=0, keepdims=True)
        z = d * jax.lax.rsqrt(var + 1e-5)
        z = z * g_ref[...] + b_ref[...]
        z = jnp.where(z > 0, z, 0.2 * z)                        # LeakyReLU(0.2)

        # ---- final 4x4 conv (K = C2*s2, N=1) + batch mean, fused on the VPU --
        # Reduce over the batch first with static row slices so w3 is passed
        # once (no host-side N-times tiling of the weight).
        zsum = z[0:s2, :]
        for ni in range(1, batch):
            zsum = zsum + z[ni * s2:(ni + 1) * s2, :]
        o_ref[...] = jnp.sum(zsum * w3_ref[...], keepdims=True) * inv_batch

    return kernel


def _full_spec(shape):
    # whole array as a single VMEM block (legal: block shape == full array dims)
    return pl.BlockSpec(shape, lambda i: (0,) * len(shape))


def dcgan_d_fused(p1dup, w1f, w2r, gamma, beta, w3r, batch, s2):
    rows_dup, k1 = p1dup.shape
    c1 = w1f.shape[1]
    kk, c2 = w2r.shape
    taps = kk // c1
    rows2 = rows_dup // taps
    assert taps * c1 == kk and rows2 * taps == rows_dup
    assert rows2 == batch * s2
    assert w3r.shape == (s2, c2)

    flops = (2 * rows_dup * k1 * c1          # layer-1 GEMM
             + 2 * rows2 * kk * c2           # layer-2 GEMM (K = taps*C1)
             + 12 * rows2 * c2)              # BN / LReLU / final reduce
    bytes_accessed = sum(int(a.size) * a.dtype.itemsize
                         for a in (p1dup, w1f, w2r, gamma, beta, w3r)) + 4

    return pl.pallas_call(
        _make_fused_kernel(taps, rows2, s2, batch),
        out_shape=jax.ShapeDtypeStruct((1, 1), jnp.float32),
        grid=(1,),
        in_specs=[_full_spec(p1dup.shape), _full_spec(w1f.shape),
                  _full_spec(w2r.shape), _full_spec(gamma.shape),
                  _full_spec(beta.shape), _full_spec(w3r.shape)],
        out_specs=_full_spec((1, 1)),
        compiler_params=pltpu.CompilerParams(
            dimension_semantics=("arbitrary",),
            vmem_limit_bytes=32 * 1024 * 1024),   # explicit budget (v7x: 64 MiB phys)
        cost_estimate=pl.CostEstimate(flops=flops, transcendentals=c2,
                                      bytes_accessed=bytes_accessed),
    )(p1dup, w1f, w2r, gamma, beta, w3r)


# ------------------------------- host-side glue ------------------------------

def _layer12_patch_indices(h, w, k1, st1, pd1, k2, st2, pd2):
    """Static numpy index arrays fusing layer-1 im2col with layer-2 tap
    duplication into a single gather from the pad-1 input.

    Returned ih/iw have shape (k2, k2, oh2, ow2, k1, k1); taps that fall on
    layer-2's zero padding are pointed at the all-zero (0, 0) corner of the
    layer-1 pad ring, so those patch rows come out exactly zero."""
    assert pd1 >= 1, "zero-row trick needs layer-1 spatial padding"
    oh1 = (h + 2 * pd1 - k1) // st1 + 1
    ow1 = (w + 2 * pd1 - k1) // st1 + 1
    oh2 = (oh1 + 2 * pd2 - k2) // st2 + 1
    ow2 = (ow1 + 2 * pd2 - k2) // st2 + 1
    kh2 = np.arange(k2).reshape(k2, 1, 1, 1, 1, 1)
    kw2 = np.arange(k2).reshape(1, k2, 1, 1, 1, 1)
    o2h = np.arange(oh2).reshape(1, 1, oh2, 1, 1, 1)
    o2w = np.arange(ow2).reshape(1, 1, 1, ow2, 1, 1)
    kh1 = np.arange(k1).reshape(1, 1, 1, 1, k1, 1)
    kw1 = np.arange(k1).reshape(1, 1, 1, 1, 1, k1)
    r1 = st2 * o2h + kh2 - pd2           # layer-1 output row feeding this tap
    q1 = st2 * o2w + kw2 - pd2           # layer-1 output col feeding this tap
    valid = (r1 >= 0) & (r1 < oh1) & (q1 >= 0) & (q1 < ow1)
    ih = np.where(valid, st1 * r1 + kh1, 0)    # index into pad-1 input rows
    iw = np.where(valid, st1 * q1 + kw1, 0)
    ih, iw = np.broadcast_arrays(ih, iw)
    return ih.astype(np.int32), iw.astype(np.int32), oh2, ow2


def _build_layer12_patches(x, k1=4, st1=2, pd1=1, k2=4, st2=2, pd2=1):
    """x: (N, C, H, W) -> (taps*N*OH2*OW2, C*k1*k1) duplicated patch matrix.

    Row order (kh2, kw2, n, oh2, ow2) (tap-major), column order (c, kh1, kw1).
    One pad + one constant-index gather + transpose + reshape."""
    n, c, h, w = x.shape
    ih, iw, oh2, ow2 = _layer12_patch_indices(h, w, k1, st1, pd1, k2, st2, pd2)
    xp = jnp.pad(x, ((0, 0), (0, 0), (pd1, pd1), (pd1, pd1)))
    g = xp[:, :, ih, iw]                           # (N, C, k2, k2, oh2, ow2, k1, k1)
    g = jnp.transpose(g, (2, 3, 0, 4, 5, 1, 6, 7))  # (k2,k2,N,oh2,ow2,C,k1,k1)
    return g.reshape(k2 * k2 * n * oh2 * ow2, c * k1 * k1), oh2, ow2


@functools.partial(jax.jit, static_argnames=("use_bf16",))
def dcgan_d_forward(x, params, use_bf16=False):
    """Pallas implementation of DCGAN_D.forward. x: (N, nc, 16, 16) -> (1,).

    Specialized to isize=16, n_extra_layers=0 (one pyramid level); deeper
    pyramids would add further fused conv+BN+LReLU stages of the same pattern.
    `use_bf16` casts the MXU operands to bf16 (f32 accumulation) — worthwhile
    on v5e/v6e/v7x at realistic batch sizes, gated off by default to keep
    bit-comparability with the f32 reference."""
    n = x.shape[0]
    w1, w2, w3 = params["w1"], params["w2"], params["w3"]
    ndf_, c2 = w1.shape[0], w2.shape[0]

    # fused layer-1 im2col + layer-2 tap duplication (single gather)
    p1dup, oh2, ow2 = _build_layer12_patches(x)            # (16*N*16, nc*16)
    s2 = oh2 * ow2

    # weight reshapes (match the patch row/column orders chosen above)
    w1f = w1.reshape(ndf_, -1).T                            # (nc*16, ndf), K=(c,kh1,kw1)
    w2r = jnp.transpose(w2, (2, 3, 1, 0)).reshape(
        w2.shape[2] * w2.shape[3] * w2.shape[1], c2)        # (16*ndf, 2ndf), K=(kh2,kw2,c1)
    w3r = jnp.transpose(w3[0], (1, 2, 0)).reshape(
        w3.shape[2] * w3.shape[3], w3.shape[1])             # (s2, 2ndf), rows=(oh2,ow2)
    gamma = params["g2"].reshape(1, -1)
    beta = params["b2"].reshape(1, -1)

    if use_bf16:
        p1dup = p1dup.astype(jnp.bfloat16)
        w1f = w1f.astype(jnp.bfloat16)
        w2r = w2r.astype(jnp.bfloat16)

    out = dcgan_d_fused(p1dup, w1f, w2r, gamma, beta, w3r, n, s2)   # (1, 1)
    return out.reshape(1)


# ------------------------------ pure-JAX reference ---------------------------

def _ref_forward(x, params):
    def conv(x, w, stride, pad):
        return jax.lax.conv_general_dilated(
            x, w, (stride, stride), [(pad, pad), (pad, pad)],
            dimension_numbers=("NCHW", "OIHW", "NCHW"))

    y = conv(x, params["w1"], 2, 1)
    y = jnp.where(y > 0, y, 0.2 * y)
    y = conv(y, params["w2"], 2, 1)
    mean = jnp.mean(y, axis=(0, 2, 3), keepdims=True)
    var = jnp.mean((y - mean) ** 2, axis=(0, 2, 3), keepdims=True)
    y = (y - mean) * jax.lax.rsqrt(var + 1e-5)
    y = y * params["g2"].reshape(1, -1, 1, 1) + params["b2"].reshape(1, -1, 1, 1)
    y = jnp.where(y > 0, y, 0.2 * y)
    y = conv(y, params["w3"], 1, 0)                  # (N, 1, 1, 1)
    return jnp.mean(y, axis=0).reshape(1)


# ----------------------------------- main ------------------------------------

if __name__ == "__main__":
    # Small config consistent with the module: isize=16 (multiple of 16), nc=3, ndf=16.
    batch, nc, isize, ndf = 2, 3, 16, 16

    key = jax.random.PRNGKey(0)
    k_x, k_w1, k_w2, k_w3, k_g2, k_b2 = jax.random.split(key, 6)

    x = jax.random.normal(k_x, (batch, nc, isize, isize), jnp.float32)

    params = {
        # DCGAN-style deterministic init: weights ~ N(0, 0.02)
        "w1": 0.02 * jax.random.normal(k_w1, (ndf, nc, 4, 4), jnp.float32),
        "w2": 0.02 * jax.random.normal(k_w2, (2 * ndf, ndf, 4, 4), jnp.float32),
        "w3": 0.02 * jax.random.normal(k_w3, (1, 2 * ndf, 4, 4), jnp.float32),
        # BatchNorm affine params (gamma ~ N(1, 0.02), beta ~ N(0, 0.02))
        "g2": 1.0 + 0.02 * jax.random.normal(k_g2, (2 * ndf,), jnp.float32),
        "b2": 0.02 * jax.random.normal(k_b2, (2 * ndf,), jnp.float32),
    }

    out = jax.block_until_ready(dcgan_d_forward(x, params))
    ref = jax.block_until_ready(_ref_forward(x, params))

    assert out.shape == (1,), f"unexpected output shape {out.shape}"
    assert jnp.all(jnp.isfinite(out)), "non-finite output"
    assert jnp.allclose(out, ref, atol=1e-4, rtol=1e-4), (out, ref)

    print("KERNEL_OK")
</pallas_src>

<mosaic_0001>
module attributes {stable_mosaic.version = 11 : i64} {
  func.func @kernel(%arg0: i32, %arg1: memref<512x48xf32, #tpu.memory_space<vmem>>, %arg2: memref<48x16xf32, #tpu.memory_space<vmem>>, %arg3: memref<256x32xf32, #tpu.memory_space<vmem>>, %arg4: memref<1x32xf32, #tpu.memory_space<vmem>>, %arg5: memref<1x32xf32, #tpu.memory_space<vmem>>, %arg6: memref<16x32xf32, #tpu.memory_space<vmem>>, %arg7: memref<1x1xf32, #tpu.memory_space<vmem>>) attributes {dimension_semantics = [#tpu.dimension_semantics<arbitrary>], iteration_bounds = array<i64: 1>, scalar_prefetch = 0 : i64, scratch_operands = 0 : i64, tpu.core_type = #tpu.core_type<tc>, window_params = [{pipeline_mode = #tpu.pipeline_mode<synchronous>, transform_indices = @transform_0, window_bounds = array<i64: 512, 48>}, {pipeline_mode = #tpu.pipeline_mode<synchronous>, transform_indices = @transform_1, window_bounds = array<i64: 48, 16>}, {pipeline_mode = #tpu.pipeline_mode<synchronous>, transform_indices = @transform_2, window_bounds = array<i64: 256, 32>}, {pipeline_mode = #tpu.pipeline_mode<synchronous>, transform_indices = @transform_3, window_bounds = array<i64: 1, 32>}, {pipeline_mode = #tpu.pipeline_mode<synchronous>, transform_indices = @transform_4, window_bounds = array<i64: 1, 32>}, {pipeline_mode = #tpu.pipeline_mode<synchronous>, transform_indices = @transform_5, window_bounds = array<i64: 16, 32>}, {pipeline_mode = #tpu.pipeline_mode<synchronous>, transform_indices = @transform_6, window_bounds = array<i64: 1, 1>}]} {
    %c0 = arith.constant 0 : index
    %c0_0 = arith.constant 0 : index
    %0 = vector.load %arg1[%c0, %c0_0] : memref<512x48xf32, #tpu.memory_space<vmem>>, vector<512x48xf32>
    %c0_1 = arith.constant 0 : index
    %c0_2 = arith.constant 0 : index
    %1 = vector.load %arg2[%c0_1, %c0_2] : memref<48x16xf32, #tpu.memory_space<vmem>>, vector<48x16xf32>
    %cst = arith.constant dense<0.000000e+00> : vector<512x16xf32>
    %2 = tpu.matmul %0, %1, %cst {dimension_numbers = #tpu.dot_dimension_numbers<[1], [0], [0], [1], [0, 0, 1, 1], [], []>} : vector<512x48xf32>, vector<48x16xf32>, vector<512x16xf32> -> vector<512x16xf32>
    %cst_3 = arith.constant 0.000000e+00 : f32
    %3 = vector.broadcast %cst_3 : f32 to vector<512x16xf32>
    %4 = arith.cmpf ogt, %2, %3 : vector<512x16xf32>
    %cst_4 = arith.constant 2.000000e-01 : f32
    %5 = vector.broadcast %cst_4 : f32 to vector<512x16xf32>
    %6 = arith.mulf %5, %2 : vector<512x16xf32>
    %7 = arith.select %4, %2, %6 : vector<512x16xi1>, vector<512x16xf32>
    %8 = vector.extract_strided_slice %7 {offsets = [0, 0], sizes = [32, 16], strides = [1, 1]} : vector<512x16xf32> to vector<32x16xf32>
    %9 = vector.extract_strided_slice %7 {offsets = [32, 0], sizes = [32, 16], strides = [1, 1]} : vector<512x16xf32> to vector<32x16xf32>
    %10 = vector.extract_strided_slice %7 {offsets = [64, 0], sizes = [32, 16], strides = [1, 1]} : vector<512x16xf32> to vector<32x16xf32>
    %11 = vector.extract_strided_slice %7 {offsets = [96, 0], sizes = [32, 16], strides = [1, 1]} : vector<512x16xf32> to vector<32x16xf32>
    %12 = vector.extract_strided_slice %7 {offsets = [128, 0], sizes = [32, 16], strides = [1, 1]} : vector<512x16xf32> to vector<32x16xf32>
    %13 = vector.extract_strided_slice %7 {offsets = [160, 0], sizes = [32, 16], strides = [1, 1]} : vector<512x16xf32> to vector<32x16xf32>
    %14 = vector.extract_strided_slice %7 {offsets = [192, 0], sizes = [32, 16], strides = [1, 1]} : vector<512x16xf32> to vector<32x16xf32>
    %15 = vector.extract_strided_slice %7 {offsets = [224, 0], sizes = [32, 16], strides = [1, 1]} : vector<512x16xf32> to vector<32x16xf32>
    %16 = vector.extract_strided_slice %7 {offsets = [256, 0], sizes = [32, 16], strides = [1, 1]} : vector<512x16xf32> to vector<32x16xf32>
    %17 = vector.extract_strided_slice %7 {offsets = [288, 0], sizes = [32, 16], strides = [1, 1]} : vector<512x16xf32> to vector<32x16xf32>
    %18 = vector.extract_strided_slice %7 {offsets = [320, 0], sizes = [32, 16], strides = [1, 1]} : vector<512x16xf32> to vector<32x16xf32>
    %19 = vector.extract_strided_slice %7 {offsets = [352, 0], sizes = [32, 16], strides = [1, 1]} : vector<512x16xf32> to vector<32x16xf32>
    %20 = vector.extract_strided_slice %7 {offsets = [384, 0], sizes = [32, 16], strides = [1, 1]} : vector<512x16xf32> to vector<32x16xf32>
    %21 = vector.extract_strided_slice %7 {offsets = [416, 0], sizes = [32, 16], strides = [1, 1]} : vector<512x16xf32> to vector<32x16xf32>
    %22 = vector.extract_strided_slice %7 {offsets = [448, 0], sizes = [32, 16], strides = [1, 1]} : vector<512x16xf32> to vector<32x16xf32>
    %23 = vector.extract_strided_slice %7 {offsets = [480, 0], sizes = [32, 16], strides = [1, 1]} : vector<512x16xf32> to vector<32x16xf32>
    %24 = tpu.concatenate %8, %9, %10, %11, %12, %13, %14, %15, %16, %17, %18, %19, %20, %21, %22, %23 in 1 : vector<32x16xf32>, vector<32x16xf32>, vector<32x16xf32>, vector<32x16xf32>, vector<32x16xf32>, vector<32x16xf32>, vector<32x16xf32>, vector<32x16xf32>, vector<32x16xf32>, vector<32x16xf32>, vector<32x16xf32>, vector<32x16xf32>, vector<32x16xf32>, vector<32x16xf32>, vector<32x16xf32>, vector<32x16xf32> -> vector<32x256xf32>
    %c0_5 = arith.constant 0 : index
    %c0_6 = arith.constant 0 : index
    %25 = vector.load %arg3[%c0_5, %c0_6] : memref<256x32xf32, #tpu.memory_space<vmem>>, vector<256x32xf32>
    %cst_7 = arith.constant dense<0.000000e+00> : vector<32x32xf32>
    %26 = tpu.matmul %24, %25, %cst_7 {dimension_numbers = #tpu.dot_dimension_numbers<[1], [0], [0], [1], [0, 0, 1, 1], [], []>} : vector<32x256xf32>, vector<256x32xf32>, vector<32x32xf32> -> vector<32x32xf32>
    %cst_8 = arith.constant dense<0.000000e+00> : vector<32xf32>
    %27 = vector.multi_reduction <add>, %26, %cst_8 [0] : vector<32x32xf32> to vector<32xf32>
    %28 = vector.shape_cast %27 : vector<32xf32> to vector<1x32xf32>
    %cst_9 = arith.constant 3.200000e+01 : f32
    %29 = vector.broadcast %cst_9 : f32 to vector<1x32xf32>
    %30 = arith.divf %28, %29 : vector<1x32xf32>
    %31 = vector.broadcast %30 : vector<1x32xf32> to vector<32x32xf32>
    %32 = arith.subf %26, %31 : vector<32x32xf32>
    %33 = arith.mulf %32, %32 : vector<32x32xf32>
    %cst_10 = arith.constant dense<0.000000e+00> : vector<32xf32>
    %34 = vector.multi_reduction <add>, %33, %cst_10 [0] : vector<32x32xf32> to vector<32xf32>
    %35 = vector.shape_cast %34 : vector<32xf32> to vector<1x32xf32>
    %cst_11 = arith.constant 3.200000e+01 : f32
    %36 = vector.broadcast %cst_11 : f32 to vector<1x32xf32>
    %37 = arith.divf %35, %36 : vector<1x32xf32>
    %cst_12 = arith.constant 9.99999974E-6 : f32
    %38 = vector.broadcast %cst_12 : f32 to vector<1x32xf32>
    %39 = arith.addf %37, %38 : vector<1x32xf32>
    %40 = math.rsqrt %39 : vector<1x32xf32>
    %41 = vector.broadcast %40 : vector<1x32xf32> to vector<32x32xf32>
    %42 = arith.mulf %32, %41 : vector<32x32xf32>
    %c0_13 = arith.constant 0 : index
    %c0_14 = arith.constant 0 : index
    %43 = vector.load %arg4[%c0_13, %c0_14] : memref<1x32xf32, #tpu.memory_space<vmem>>, vector<1x32xf32>
    %44 = vector.broadcast %43 : vector<1x32xf32> to vector<32x32xf32>
    %45 = arith.mulf %42, %44 : vector<32x32xf32>
    %c0_15 = arith.constant 0 : index
    %c0_16 = arith.constant 0 : index
    %46 = vector.load %arg5[%c0_15, %c0_16] : memref<1x32xf32, #tpu.memory_space<vmem>>, vector<1x32xf32>
    %47 = vector.broadcast %46 : vector<1x32xf32> to vector<32x32xf32>
    %48 = arith.addf %45, %47 : vector<32x32xf32>
    %cst_17 = arith.constant 0.000000e+00 : f32
    %49 = vector.broadcast %cst_17 : f32 to vector<32x32xf32>
    %50 = arith.cmpf ogt, %48, %49 : vector<32x32xf32>
    %cst_18 = arith.constant 2.000000e-01 : f32
    %51 = vector.broadcast %cst_18 : f32 to vector<32x32xf32>
    %52 = arith.mulf %51, %48 : vector<32x32xf32>
    %53 = arith.select %50, %48, %52 : vector<32x32xi1>, vector<32x32xf32>
    %54 = vector.extract_strided_slice %53 {offsets = [0, 0], sizes = [16, 32], strides = [1, 1]} : vector<32x32xf32> to vector<16x32xf32>
    %55 = vector.extract_strided_slice %53 {offsets = [16, 0], sizes = [16, 32], strides = [1, 1]} : vector<32x32xf32> to vector<16x32xf32>
    %56 = arith.addf %54, %55 : vector<16x32xf32>
    %c0_19 = arith.constant 0 : index
    %c0_20 = arith.constant 0 : index
    %57 = vector.load %arg6[%c0_19, %c0_20] : memref<16x32xf32, #tpu.memory_space<vmem>>, vector<16x32xf32>
    %58 = arith.mulf %56, %57 : vector<16x32xf32>
    %59 = vector.shape_cast %58 : vector<16x32xf32> to vector<1x16x32xf32>
    %cst_21 = arith.constant dense<0.000000e+00> : vector<1xf32>
    %60 = vector.multi_reduction <add>, %59, %cst_21 [1, 2] : vector<1x16x32xf32> to vector<1xf32>
    %61 = vector.shape_cast %60 : vector<1xf32> to vector<1x1x1xf32>
    %62 = vector.extract %61[0, 0, 0] : f32 from vector<1x1x1xf32>
    %63 = vector.broadcast %62 : f32 to vector<1x1xf32>
    %cst_22 = arith.constant 5.000000e-01 : f32
    %64 = vector.broadcast %cst_22 : f32 to vector<1x1xf32>
    %65 = arith.mulf %63, %64 : vector<1x1xf32>
    %c0_23 = arith.constant 0 : index
    %c0_24 = arith.constant 0 : index
    %66 = vector.load %arg7[%c0_23, %c0_24] : memref<1x1xf32, #tpu.memory_space<vmem>>, vector<1x1xf32>
    tpu.vector_store %arg7[%c0_23, %c0_24], %65 {strides = array<i32>} : memref<1x1xf32, #tpu.memory_space<vmem>>, vector<1x1xf32>,
    return
  }
  func.func @transform_0(%arg0: i32) -> (i32, i32) {
    %c0_i32 = arith.constant 0 : i32
    %c0_i32_0 = arith.constant 0 : i32
    %c0_i32_1 = arith.constant 0 : i32
    return %c0_i32, %c0_i32_0 : i32, i32
  }
  func.func @transform_1(%arg0: i32) -> (i32, i32) {
    %c0_i32 = arith.constant 0 : i32
    %c0_i32_0 = arith.constant 0 : i32
    %c0_i32_1 = arith.constant 0 : i32
    return %c0_i32, %c0_i32_0 : i32, i32
  }
  func.func @transform_2(%arg0: i32) -> (i32, i32) {
    %c0_i32 = arith.constant 0 : i32
    %c0_i32_0 = arith.constant 0 : i32
    %c0_i32_1 = arith.constant 0 : i32
    return %c0_i32, %c0_i32_0 : i32, i32
  }
  func.func @transform_3(%arg0: i32) -> (i32, i32) {
    %c0_i32 = arith.constant 0 : i32
    %c0_i32_0 = arith.constant 0 : i32
    %c0_i32_1 = arith.constant 0 : i32
    return %c0_i32, %c0_i32_0 : i32, i32
  }
  func.func @transform_4(%arg0: i32) -> (i32, i32) {
    %c0_i32 = arith.constant 0 : i32
    %c0_i32_0 = arith.constant 0 : i32
    %c0_i32_1 = arith.constant 0 : i32
    return %c0_i32, %c0_i32_0 : i32, i32
  }
  func.func @transform_5(%arg0: i32) -> (i32, i32) {
    %c0_i32 = arith.constant 0 : i32
    %c0_i32_0 = arith.constant 0 : i32
    %c0_i32_1 = arith.constant 0 : i32
    return %c0_i32, %c0_i32_0 : i32, i32
  }
  func.func @transform_6(%arg0: i32) -> (i32, i32) {
    %c0_i32 = arith.constant 0 : i32
    %c0_i32_0 = arith.constant 0 : i32
    %c0_i32_1 = arith.constant 0 : i32
    return %c0_i32, %c0_i32_0 : i32, i32
  }
}

</mosaic_0001>

<llo_original>
// kernel: dcgan_d_forward.1
$region0: #{dcgan_d_forward.1}
  #allocation0 [shape = 'u32[]', space=smem, size = 0x4, offset = 0x4, fixed_abs, tag = 'smem constant byte address 0x4 - core index']
  #allocation1 [shape = 'u32[144,128]{1,0:T(1,128)}', space=vmem, size = 0x12000, scoped, tag = 'internal scratch']
  %s0 = inlined_call_operand.vmem [shape: f32[512,48], index: 0, kind: input, shape index: {}]
  %s1 = inlined_call_operand.vmem [shape: f32[48,16], index: 1, kind: input, shape index: {}]
  %s2 = inlined_call_operand.vmem [shape: f32[256,32], index: 2, kind: input, shape index: {}]
  %s3 = inlined_call_operand.vmem [shape: f32[1,32], index: 3, kind: input, shape index: {}]
  %s4 = inlined_call_operand.vmem [shape: f32[1,32], index: 4, kind: input, shape index: {}]
  %s5 = inlined_call_operand.vmem [shape: f32[16,32], index: 5, kind: input, shape index: {}]
  %s6 = inlined_call_operand.hbm [shape: f32[1,1], index: 6, kind: output, shape index: {}]
  %s7 = sld [smem:[#allocation0]]
  $region34: #{dcgan_d_forward.1} parent=0
    _
  %s9 = ssub.s32 1, %s7
  %s10 = scalar_select 0, %s9, %s7
  $region1: #{dcgan_d_forward.1} parent=0
    #allocation2 [shape = 'u8[512]{0}', space=vmem, size = 0x400, scoped, tag = 'output window, operand 0, single buffered']
    #allocation3 [shape = 's32[1]{0}', space=sflag, size = 0x4, scoped, tag = 'scoped memory for dcgan_d_forward.1']
    %11 = vsyncpa [#allocation3], 0
    // Predicated region
    $region2: #{dcgan_d_forward.1} parent=1 // pred_check
      _
    $region3: #{dcgan_d_forward.1} parent=1 // pred_check_branch
      %13 = sbr.rel (0) target = $region5
    $region4: #{dcgan_d_forward.1} parent=1 // pred_region
      _
    $region5: #{dcgan_d_forward.1} parent=1 // pred_fallthru
      _
    // Predicated region
    $region6: #{dcgan_d_forward.1} parent=1 // pred_check
      _
    $region7: #{dcgan_d_forward.1} parent=1 // pred_check_branch
      %15 = sbr.rel (0) target = $region9
    $region8: #{dcgan_d_forward.1} parent=1 // pred_region
      _
    $region9: #{dcgan_d_forward.1} parent=1 // pred_fallthru
      _
    // Predicated region
    $region10: #{dcgan_d_forward.1} parent=1 // pred_check
      _
    $region11: #{dcgan_d_forward.1} parent=1 // pred_check_branch
      %17 = sbr.rel (0) target = $region13
    $region12: #{dcgan_d_forward.1} parent=1 // pred_region
      _
    $region13: #{dcgan_d_forward.1} parent=1 // pred_fallthru
      _
    // Predicated region
    $region14: #{dcgan_d_forward.1} parent=1 // pred_check
      _
    $region15: #{dcgan_d_forward.1} parent=1 // pred_check_branch
      %19 = sbr.rel (0) target = $region17
    $region16: #{dcgan_d_forward.1} parent=1 // pred_region
      _
    $region17: #{dcgan_d_forward.1} parent=1 // pred_fallthru
      _
    // Predicated region
    $region18: #{dcgan_d_forward.1} parent=1 // pred_check
      _
    $region19: #{dcgan_d_forward.1} parent=1 // pred_check_branch
      %21 = sbr.rel (0) target = $region21
    $region20: #{dcgan_d_forward.1} parent=1 // pred_region
      _
    $region21: #{dcgan_d_forward.1} parent=1 // pred_fallthru
      _
    // Predicated region
    $region22: #{dcgan_d_forward.1} parent=1 // pred_check
      _
    $region23: #{dcgan_d_forward.1} parent=1 // pred_check_branch
      %23 = sbr.rel (0) target = $region25
    $region24: #{dcgan_d_forward.1} parent=1 // pred_region
      _
    $region25: #{dcgan_d_forward.1} parent=1 // pred_fallthru
      _
    %v24 = vld [vmem:[%s0] sm:$0xff]
    %v25 = vld [vmem:[%s0 + $0x8] sm:$0xff]
    %v26 = vld [vmem:[%s0 + $0x10] sm:$0xff]
    %v27 = vld [vmem:[%s0 + $0x18] sm:$0xff]
    %v28 = vld [vmem:[%s0 + $0x20] sm:$0xff]
    %v29 = vld [vmem:[%s0 + $0x28] sm:$0xff]
    %v30 = vld [vmem:[%s0 + $0x30] sm:$0xff]
    %v31 = vld [vmem:[%s0 + $0x38] sm:$0xff]
    %v32 = vld [vmem:[%s0 + $0x40] sm:$0xff]
    %v33 = vld [vmem:[%s0 + $0x48] sm:$0xff]
    %v34 = vld [vmem:[%s0 + $0x50] sm:$0xff]
    %v35 = vld [vmem:[%s0 + $0x58] sm:$0xff]
    %v36 = vld [vmem:[%s0 + $0x60] sm:$0xff]
    %v37 = vld [vmem:[%s0 + $0x68] sm:$0xff]
    %v38 = vld [vmem:[%s0 + $0x70] sm:$0xff]
    %v39 = vld [vmem:[%s0 + $0x78] sm:$0xff]
    %v40 = vld [vmem:[%s0 + $0x80] sm:$0xff]
    %v41 = vld [vmem:[%s0 + $0x88] sm:$0xff]
    %v42 = vld [vmem:[%s0 + $0x90] sm:$0xff]
    %v43 = vld [vmem:[%s0 + $0x98] sm:$0xff]
    %v44 = vld [vmem:[%s0 + $0xa0] sm:$0xff]
    %v45 = vld [vmem:[%s0 + $0xa8] sm:$0xff]
    %v46 = vld [vmem:[%s0 + $0xb0] sm:$0xff]
    %v47 = vld [vmem:[%s0 + $0xb8] sm:$0xff]
    %v48 = vld [vmem:[%s0 + $0xc0] sm:$0xff]
    %v49 = vld [vmem:[%s0 + $0xc8] sm:$0xff]
    %v50 = vld [vmem:[%s0 + $0xd0] sm:$0xff]
    %v51 = vld [vmem:[%s0 + $0xd8] sm:$0xff]
    %v52 = vld [vmem:[%s0 + $0xe0] sm:$0xff]
    %v53 = vld [vmem:[%s0 + $0xe8] sm:$0xff]
    %v54 = vld [vmem:[%s0 + $0xf0] sm:$0xff]
    %v55 = vld [vmem:[%s0 + $0xf8] sm:$0xff]
    %v56 = vld [vmem:[%s0 + $0x100] sm:$0xff]
    %v57 = vld [vmem:[%s0 + $0x108] sm:$0xff]
    %v58 = vld [vmem:[%s0 + $0x110] sm:$0xff]
    %v59 = vld [vmem:[%s0 + $0x118] sm:$0xff]
    %v60 = vld [vmem:[%s0 + $0x120] sm:$0xff]
    %v61 = vld [vmem:[%s0 + $0x128] sm:$0xff]
    %v62 = vld [vmem:[%s0 + $0x130] sm:$0xff]
    %v63 = vld [vmem:[%s0 + $0x138] sm:$0xff]
    %v64 = vld [vmem:[%s0 + $0x140] sm:$0xff]
    %v65 = vld [vmem:[%s0 + $0x148] sm:$0xff]
    %v66 = vld [vmem:[%s0 + $0x150] sm:$0xff]
    %v67 = vld [vmem:[%s0 + $0x158] sm:$0xff]
    %v68 = vld [vmem:[%s0 + $0x160] sm:$0xff]
    %v69 = vld [vmem:[%s0 + $0x168] sm:$0xff]
    %v70 = vld [vmem:[%s0 + $0x170] sm:$0xff]
    %v71 = vld [vmem:[%s0 + $0x178] sm:$0xff]
    %v72 = vld [vmem:[%s0 + $0x180] sm:$0xff]
    %v73 = vld [vmem:[%s0 + $0x188] sm:$0xff]
    %v74 = vld [vmem:[%s0 + $0x190] sm:$0xff]
    %v75 = vld [vmem:[%s0 + $0x198] sm:$0xff]
    %v76 = vld [vmem:[%s0 + $0x1a0] sm:$0xff]
    %v77 = vld [vmem:[%s0 + $0x1a8] sm:$0xff]
    %v78 = vld [vmem:[%s0 + $0x1b0] sm:$0xff]
    %v79 = vld [vmem:[%s0 + $0x1b8] sm:$0xff]
    %v80 = vld [vmem:[%s0 + $0x1c0] sm:$0xff]
    %v81 = vld [vmem:[%s0 + $0x1c8] sm:$0xff]
    %v82 = vld [vmem:[%s0 + $0x1d0] sm:$0xff]
    %v83 = vld [vmem:[%s0 + $0x1d8] sm:$0xff]
    %v84 = vld [vmem:[%s0 + $0x1e0] sm:$0xff]
    %v85 = vld [vmem:[%s0 + $0x1e8] sm:$0xff]
    %v86 = vld [vmem:[%s0 + $0x1f0] sm:$0xff]
    %v87 = vld [vmem:[%s0 + $0x1f8] sm:$0xff]
    %v88 = vld [vmem:[%s1] sm:$0xff]
    %v89 = vld [vmem:[%s1 + $0x8] sm:$0xff]
    %v90 = vld [vmem:[%s1 + $0x10] sm:$0xff]
    %v91 = vld [vmem:[%s1 + $0x18] sm:$0xff]
    %v92 = vld [vmem:[%s1 + $0x20] sm:$0xff]
    %v93 = vld [vmem:[%s1 + $0x28] sm:$0xff]
    %vm94 = vcmask 392192
    %v96 = vsel %vm94, %v24, 0
    %v99 = vsel %vm94, %v25, 0
    %v102 = vsel %vm94, %v26, 0
    %v105 = vsel %vm94, %v27, 0
    %v108 = vsel %vm94, %v28, 0
    %v111 = vsel %vm94, %v29, 0
    %v114 = vsel %vm94, %v30, 0
    %v117 = vsel %vm94, %v31, 0
    %v120 = vsel %vm94, %v32, 0
    %v123 = vsel %vm94, %v33, 0
    %v126 = vsel %vm94, %v34, 0
    %v129 = vsel %vm94, %v35, 0
    %v132 = vsel %vm94, %v36, 0
    %v135 = vsel %vm94, %v37, 0
    %v138 = vsel %vm94, %v38, 0
    %v141 = vsel %vm94, %v39, 0
    %v144 = vsel %vm94, %v40, 0
    %v147 = vsel %vm94, %v41, 0
    %v150 = vsel %vm94, %v42, 0
    %v153 = vsel %vm94, %v43, 0
    %v156 = vsel %vm94, %v44, 0
    %v159 = vsel %vm94, %v45, 0
    %v162 = vsel %vm94, %v46, 0
    %v165 = vsel %vm94, %v47, 0
    %v168 = vsel %vm94, %v48, 0
    %v171 = vsel %vm94, %v49, 0
    %v174 = vsel %vm94, %v50, 0
    %v177 = vsel %vm94, %v51, 0
    %v180 = vsel %vm94, %v52, 0
    %v183 = vsel %vm94, %v53, 0
    %v186 = vsel %vm94, %v54, 0
    %v189 = vsel %vm94, %v55, 0
    %v192 = vsel %vm94, %v56, 0
    %v195 = vsel %vm94, %v57, 0
    %v198 = vsel %vm94, %v58, 0
    %v201 = vsel %vm94, %v59, 0
    %v204 = vsel %vm94, %v60, 0
    %v207 = vsel %vm94, %v61, 0
    %v210 = vsel %vm94, %v62, 0
    %v213 = vsel %vm94, %v63, 0
    %v216 = vsel %vm94, %v64, 0
    %v219 = vsel %vm94, %v65, 0
    %v222 = vsel %vm94, %v66, 0
    %v225 = vsel %vm94, %v67, 0
    %v228 = vsel %vm94, %v68, 0
    %v231 = vsel %vm94, %v69, 0
    %v234 = vsel %vm94, %v70, 0
    %v237 = vsel %vm94, %v71, 0
    %v240 = vsel %vm94, %v72, 0
    %v243 = vsel %vm94, %v73, 0
    %v246 = vsel %vm94, %v74, 0
    %v249 = vsel %vm94, %v75, 0
    %v252 = vsel %vm94, %v76, 0
    %v255 = vsel %vm94, %v77, 0
    %v258 = vsel %vm94, %v78, 0
    %v261 = vsel %vm94, %v79, 0
    %v264 = vsel %vm94, %v80, 0
    %v267 = vsel %vm94, %v81, 0
    %v270 = vsel %vm94, %v82, 0
    %v273 = vsel %vm94, %v83, 0
    %v276 = vsel %vm94, %v84, 0
    %v279 = vsel %vm94, %v85, 0
    %v282 = vsel %vm94, %v86, 0
    %v285 = vsel %vm94, %v87, 0
    %287 = vmatprep.subr.mxu0 0.0
    %288 = vmatpush1.msra.mxu0 %v88
    %289 = vmatprep.subr.mxu0 0.0
    %290 = vmatpush1.msra.mxu0 %v89
    %291 = vmatprep.subr.mxu0 0.0
    %292 = vmatpush1.msra.mxu0 %v90
    %293 = vmatprep.subr.mxu0 0.0
    %294 = vmatpush1.msra.mxu0 %v91
    %295 = vmatprep.subr.mxu0 0.0
    %296 = vmatpush1.msra.mxu0 %v92
    %297 = vmatprep.subr.mxu0 0.0
    %298 = vmatpush1.msra.mxu0 %v93
    %299 = vmatprep.subr.mxu0 0.0
    %300 = vmatpush1.msra.mxu0 0.0
    %301 = vmatprep.subr.mxu0 0.0
    %302 = vmatpush1.msra.mxu0 0.0
    %303 = vmatprep.subr.mxu0 0.0
    %304 = vmatpush1.msra.mxu0 0.0
    %305 = vmatprep.subr.mxu0 0.0
    %306 = vmatpush1.msra.mxu0 0.0
    %307 = vmatprep.subr.mxu0 0.0
    %308 = vmatpush1.msra.mxu0 0.0
    %309 = vmatprep.subr.mxu0 0.0
    %310 = vmatpush1.msra.mxu0 0.0
    %311 = vmatprep.subr.mxu0 0.0
    %312 = vmatpush1.msra.mxu0 0.0
    %313 = vmatprep.subr.mxu0 0.0
    %314 = vmatpush1.msra.mxu0 0.0
    %315 = vmatprep.subr.mxu0 0.0
    %316 = vmatpush1.msra.mxu0 0.0
    %317 = vmatprep.subr.mxu0 0.0
    %318 = vmatpush1.msra.mxu0 0.0
    %319 = vmatprep.subr.mxu0 0.0
    %320 = vmatpush1.msra.mxu0 0.0
    %321 = vmatprep.subr.mxu0 0.0
    %322 = vmatpush1.msra.mxu0 0.0
    %323 = vmatprep.subr.mxu0 0.0
    %324 = vmatpush1.msra.mxu0 0.0
    %325 = vmatprep.subr.mxu0 0.0
    %326 = vmatpush1.msra.mxu0 0.0
    %327 = vmatprep.subr.mxu0 0.0
    %328 = vmatpush1.msra.mxu0 0.0
    %329 = vmatprep.subr.mxu0 0.0
    %330 = vmatpush1.msra.mxu0 0.0
    %331 = vmatprep.subr.mxu0 0.0
    %332 = vmatpush1.msra.mxu0 0.0
    %333 = vmatprep.subr.mxu0 0.0
    %334 = vmatpush1.msra.mxu0 0.0
    %335 = vmatprep.subr.mxu0 0.0
    %336 = vmatpush1.msra.mxu0 0.0
    %337 = vmatprep.subr.mxu0 0.0
    %338 = vmatpush1.msra.mxu0 0.0
    %339 = vmatprep.subr.mxu0 0.0
    %340 = vmatpush1.msra.mxu0 0.0
    %341 = vmatprep.subr.mxu0 0.0
    %342 = vmatpush1.msra.mxu0 0.0
    %343 = vmatprep.subr.mxu0 0.0
    %344 = vmatpush1.msra.mxu0 0.0
    %345 = vmatprep.subr.mxu0 0.0
    %346 = vmatpush1.msra.mxu0 0.0
    %347 = vmatprep.subr.mxu0 0.0
    %348 = vmatpush1.msra.mxu0 0.0
    %349 = vmatprep.subr.mxu0 0.0
    %350 = vmatpush1.msra.mxu0 0.0
    %351 = vmatprep.mubr.f32.mxu0 0.0
    %352 = vmatmul.mubr.f32.gmra.mrb[0].mxu0 %v96
    %v353 = vpop.f32.mrb[0].mxu0
    %v354 = vadd.f32 0.0, %v353
    %v355 = vpop.f32.mrb[0].mxu0
    %356 = vmatprep.mubr.f32.mxu0 0.0
    %357 = vmatmul.mubr.f32.gmra.mrb[0].mxu0 %v99
    %v358 = vpop.f32.mrb[0].mxu0
    %v359 = vadd.f32 0.0, %v358
    %v360 = vpop.f32.mrb[0].mxu0
    %361 = vmatprep.mubr.f32.mxu0 0.0
    %362 = vmatmul.mubr.f32.gmra.mrb[0].mxu0 %v102
    %v363 = vpop.f32.mrb[0].mxu0
    %v364 = vadd.f32 0.0, %v363
    %v365 = vpop.f32.mrb[0].mxu0
    %366 = vmatprep.mubr.f32.mxu0 0.0
    %367 = vmatmul.mubr.f32.gmra.mrb[0].mxu0 %v105
    %v368 = vpop.f32.mrb[0].mxu0
    %v369 = vadd.f32 0.0, %v368
    %v370 = vpop.f32.mrb[0].mxu0
    %371 = vmatprep.mubr.f32.mxu0 0.0
    %372 = vmatmul.mubr.f32.gmra.mrb[0].mxu0 %v108
    %v373 = vpop.f32.mrb[0].mxu0
    %v374 = vadd.f32 0.0, %v373
    %v375 = vpop.f32.mrb[0].mxu0
    %376 = vmatprep.mubr.f32.mxu0 0.0
    %377 = vmatmul.mubr.f32.gmra.mrb[0].mxu0 %v111
    %v378 = vpop.f32.mrb[0].mxu0
    %v379 = vadd.f32 0.0, %v378
    %v380 = vpop.f32.mrb[0].mxu0
    %381 = vmatprep.mubr.f32.mxu0 0.0
    %382 = vmatmul.mubr.f32.gmra.mrb[0].mxu0 %v114
    %v383 = vpop.f32.mrb[0].mxu0
    %v384 = vadd.f32 0.0, %v383
    %v385 = vpop.f32.mrb[0].mxu0
    %386 = vmatprep.mubr.f32.mxu0 0.0
    %387 = vmatmul.mubr.f32.gmra.mrb[0].mxu0 %v117
    %v388 = vpop.f32.mrb[0].mxu0
    %v389 = vadd.f32 0.0, %v388
    %v390 = vpop.f32.mrb[0].mxu0
    %391 = vmatprep.mubr.f32.mxu0 0.0
    %392 = vmatmul.mubr.f32.gmra.mrb[0].mxu0 %v120
    %v393 = vpop.f32.mrb[0].mxu0
    %v394 = vadd.f32 0.0, %v393
    %v395 = vpop.f32.mrb[0].mxu0
    %396 = vmatprep.mubr.f32.mxu0 0.0
    %397 = vmatmul.mubr.f32.gmra.mrb[0].mxu0 %v123
    %v398 = vpop.f32.mrb[0].mxu0
    %v399 = vadd.f32 0.0, %v398
    %v400 = vpop.f32.mrb[0].mxu0
    %401 = vmatprep.mubr.f32.mxu0 0.0
    %402 = vmatmul.mubr.f32.gmra.mrb[0].mxu0 %v126
    %v403 = vpop.f32.mrb[0].mxu0
    %v404 = vadd.f32 0.0, %v403
    %v405 = vpop.f32.mrb[0].mxu0
    %406 = vmatprep.mubr.f32.mxu0 0.0
    %407 = vmatmul.mubr.f32.gmra.mrb[0].mxu0 %v129
    %v408 = vpop.f32.mrb[0].mxu0
    %v409 = vadd.f32 0.0, %v408
    %v410 = vpop.f32.mrb[0].mxu0
    %411 = vmatprep.mubr.f32.mxu0 0.0
    %412 = vmatmul.mubr.f32.gmra.mrb[0].mxu0 %v132
    %v413 = vpop.f32.mrb[0].mxu0
    %v414 = vadd.f32 0.0, %v413
    %v415 = vpop.f32.mrb[0].mxu0
    %416 = vmatprep.mubr.f32.mxu0 0.0
    %417 = vmatmul.mubr.f32.gmra.mrb[0].mxu0 %v135
    %v418 = vpop.f32.mrb[0].mxu0
    %v419 = vadd.f32 0.0, %v418
    %v420 = vpop.f32.mrb[0].mxu0
    %421 = vmatprep.mubr.f32.mxu0 0.0
    %422 = vmatmul.mubr.f32.gmra.mrb[0].mxu0 %v138
    %v423 = vpop.f32.mrb[0].mxu0
    %v424 = vadd.f32 0.0, %v423
    %v425 = vpop.f32.mrb[0].mxu0
    %426 = vmatprep.mubr.f32.mxu0 0.0
    %427 = vmatmul.mubr.f32.gmra.mrb[0].mxu0 %v141
    %v428 = vpop.f32.mrb[0].mxu0
    %v429 = vadd.f32 0.0, %v428
    %v430 = vpop.f32.mrb[0].mxu0
    %431 = vmatprep.mubr.f32.mxu0 0.0
    %432 = vmatmul.mubr.f32.gmra.mrb[0].mxu0 %v144
    %v433 = vpop.f32.mrb[0].mxu0
    %v434 = vadd.f32 0.0, %v433
    %v435 = vpop.f32.mrb[0].mxu0
    %436 = vmatprep.mubr.f32.mxu0 0.0
    %437 = vmatmul.mubr.f32.gmra.mrb[0].mxu0 %v147
    %v438 = vpop.f32.mrb[0].mxu0
    %v439 = vadd.f32 0.0, %v438
    %v440 = vpop.f32.mrb[0].mxu0
    %441 = vmatprep.mubr.f32.mxu0 0.0
    %442 = vmatmul.mubr.f32.gmra.mrb[0].mxu0 %v150
    %v443 = vpop.f32.mrb[0].mxu0
    %v444 = vadd.f32 0.0, %v443
    %v445 = vpop.f32.mrb[0].mxu0
    %446 = vmatprep.mubr.f32.mxu0 0.0
    %447 = vmatmul.mubr.f32.gmra.mrb[0].mxu0 %v153
    %v448 = vpop.f32.mrb[0].mxu0
    %v449 = vadd.f32 0.0, %v448
    %v450 = vpop.f32.mrb[0].mxu0
    %451 = vmatprep.mubr.f32.mxu0 0.0
    %452 = vmatmul.mubr.f32.gmra.mrb[0].mxu0 %v156
    %v453 = vpop.f32.mrb[0].mxu0
    %v454 = vadd.f32 0.0, %v453
    %v455 = vpop.f32.mrb[0].mxu0
    %456 = vmatprep.mubr.f32.mxu0 0.0
    %457 = vmatmul.mubr.f32.gmra.mrb[0].mxu0 %v159
    %v458 = vpop.f32.mrb[0].mxu0
    %v459 = vadd.f32 0.0, %v458
    %v460 = vpop.f32.mrb[0].mxu0
    %461 = vmatprep.mubr.f32.mxu0 0.0
    %462 = vmatmul.mubr.f32.gmra.mrb[0].mxu0 %v162
    %v463 = vpop.f32.mrb[0].mxu0
    %v464 = vadd.f32 0.0, %v463
    %v465 = vpop.f32.mrb[0].mxu0
    %466 = vmatprep.mubr.f32.mxu0 0.0
    %467 = vmatmul.mubr.f32.gmra.mrb[0].mxu0 %v165
    %v468 = vpop.f32.mrb[0].mxu0
    %v469 = vadd.f32 0.0, %v468
    %v470 = vpop.f32.mrb[0].mxu0
    %471 = vmatprep.mubr.f32.mxu0 0.0
    %472 = vmatmul.mubr.f32.gmra.mrb[0].mxu0 %v168
    %v473 = vpop.f32.mrb[0].mxu0
    %v474 = vadd.f32 0.0, %v473
    %v475 = vpop.f32.mrb[0].mxu0
    %476 = vmatprep.mubr.f32.mxu0 0.0
    %477 = vmatmul.mubr.f32.gmra.mrb[0].mxu0 %v171
    %v478 = vpop.f32.mrb[0].mxu0
    %v479 = vadd.f32 0.0, %v478
    %v480 = vpop.f32.mrb[0].mxu0
    %481 = vmatprep.mubr.f32.mxu0 0.0
    %482 = vmatmul.mubr.f32.gmra.mrb[0].mxu0 %v174
    %v483 = vpop.f32.mrb[0].mxu0
    %v484 = vadd.f32 0.0, %v483
    %v485 = vpop.f32.mrb[0].mxu0
    %486 = vmatprep.mubr.f32.mxu0 0.0
    %487 = vmatmul.mubr.f32.gmra.mrb[0].mxu0 %v177
    %v488 = vpop.f32.mrb[0].mxu0
    %v489 = vadd.f32 0.0, %v488
    %v490 = vpop.f32.mrb[0].mxu0
    %491 = vmatprep.mubr.f32.mxu0 0.0
    %492 = vmatmul.mubr.f32.gmra.mrb[0].mxu0 %v180
    %v493 = vpop.f32.mrb[0].mxu0
    %v494 = vadd.f32 0.0, %v493
    %v495 = vpop.f32.mrb[0].mxu0
    %496 = vmatprep.mubr.f32.mxu0 0.0
    %497 = vmatmul.mubr.f32.gmra.mrb[0].mxu0 %v183
    %v498 = vpop.f32.mrb[0].mxu0
    %v499 = vadd.f32 0.0, %v498
    %v500 = vpop.f32.mrb[0].mxu0
    %501 = vmatprep.mubr.f32.mxu0 0.0
    %502 = vmatmul.mubr.f32.gmra.mrb[0].mxu0 %v186
    %v503 = vpop.f32.mrb[0].mxu0
    %v504 = vadd.f32 0.0, %v503
    %v505 = vpop.f32.mrb[0].mxu0
    %506 = vmatprep.mubr.f32.mxu0 0.0
    %507 = vmatmul.mubr.f32.gmra.mrb[0].mxu0 %v189
    %v508 = vpop.f32.mrb[0].mxu0
    %v509 = vadd.f32 0.0, %v508
    %v510 = vpop.f32.mrb[0].mxu0
    %511 = vmatprep.mubr.f32.mxu0 0.0
    %512 = vmatmul.mubr.f32.gmra.mrb[0].mxu0 %v192
    %v513 = vpop.f32.mrb[0].mxu0
    %v514 = vadd.f32 0.0, %v513
    %v515 = vpop.f32.mrb[0].mxu0
    %516 = vmatprep.mubr.f32.mxu0 0.0
    %517 = vmatmul.mubr.f32.gmra.mrb[0].mxu0 %v195
    %v518 = vpop.f32.mrb[0].mxu0
    %v519 = vadd.f32 0.0, %v518
    %v520 = vpop.f32.mrb[0].mxu0
    %521 = vmatprep.mubr.f32.mxu0 0.0
    %522 = vmatmul.mubr.f32.gmra.mrb[0].mxu0 %v198
    %v523 = vpop.f32.mrb[0].mxu0
    %v524 = vadd.f32 0.0, %v523
    %v525 = vpop.f32.mrb[0].mxu0
    %526 = vmatprep.mubr.f32.mxu0 0.0
    %527 = vmatmul.mubr.f32.gmra.mrb[0].mxu0 %v201
    %v528 = vpop.f32.mrb[0].mxu0
    %v529 = vadd.f32 0.0, %v528
    %v530 = vpop.f32.mrb[0].mxu0
    %531 = vmatprep.mubr.f32.mxu0 0.0
    %532 = vmatmul.mubr.f32.gmra.mrb[0].mxu0 %v204
    %v533 = vpop.f32.mrb[0].mxu0
    %v534 = vadd.f32 0.0, %v533
    %v535 = vpop.f32.mrb[0].mxu0
    %536 = vmatprep.mubr.f32.mxu0 0.0
    %537 = vmatmul.mubr.f32.gmra.mrb[0].mxu0 %v207
    %v538 = vpop.f32.mrb[0].mxu0
    %v539 = vadd.f32 0.0, %v538
    %v540 = vpop.f32.mrb[0].mxu0
    %541 = vmatprep.mubr.f32.mxu0 0.0
    %542 = vmatmul.mubr.f32.gmra.mrb[0].mxu0 %v210
    %v543 = vpop.f32.mrb[0].mxu0
    %v544 = vadd.f32 0.0, %v543
    %v545 = vpop.f32.mrb[0].mxu0
    %546 = vmatprep.mubr.f32.mxu0 0.0
    %547 = vmatmul.mubr.f32.gmra.mrb[0].mxu0 %v213
    %v548 = vpop.f32.mrb[0].mxu0
    %v549 = vadd.f32 0.0, %v548
    %v550 = vpop.f32.mrb[0].mxu0
    %551 = vmatprep.mubr.f32.mxu0 0.0
    %552 = vmatmul.mubr.f32.gmra.mrb[0].mxu0 %v216
    %v553 = vpop.f32.mrb[0].mxu0
    %v554 = vadd.f32 0.0, %v553
    %v555 = vpop.f32.mrb[0].mxu0
    %556 = vmatprep.mubr.f32.mxu0 0.0
    %557 = vmatmul.mubr.f32.gmra.mrb[0].mxu0 %v219
    %v558 = vpop.f32.mrb[0].mxu0
    %v559 = vadd.f32 0.0, %v558
    %v560 = vpop.f32.mrb[0].mxu0
    %561 = vmatprep.mubr.f32.mxu0 0.0
    %562 = vmatmul.mubr.f32.gmra.mrb[0].mxu0 %v222
    %v563 = vpop.f32.mrb[0].mxu0
    %v564 = vadd.f32 0.0, %v563
    %v565 = vpop.f32.mrb[0].mxu0
    %566 = vmatprep.mubr.f32.mxu0 0.0
    %567 = vmatmul.mubr.f32.gmra.mrb[0].mxu0 %v225
    %v568 = vpop.f32.mrb[0].mxu0
    %v569 = vadd.f32 0.0, %v568
    %v570 = vpop.f32.mrb[0].mxu0
    %571 = vmatprep.mubr.f32.mxu0 0.0
    %572 = vmatmul.mubr.f32.gmra.mrb[0].mxu0 %v228
    %v573 = vpop.f32.mrb[0].mxu0
    %v574 = vadd.f32 0.0, %v573
    %v575 = vpop.f32.mrb[0].mxu0
    %576 = vmatprep.mubr.f32.mxu0 0.0
    %577 = vmatmul.mubr.f32.gmra.mrb[0].mxu0 %v231
    %v578 = vpop.f32.mrb[0].mxu0
    %v579 = vadd.f32 0.0, %v578
    %v580 = vpop.f32.mrb[0].mxu0
    %581 = vmatprep.mubr.f32.mxu0 0.0
    %582 = vmatmul.mubr.f32.gmra.mrb[0].mxu0 %v234
    %v583 = vpop.f32.mrb[0].mxu0
    %v584 = vadd.f32 0.0, %v583
    %v585 = vpop.f32.mrb[0].mxu0
    %586 = vmatprep.mubr.f32.mxu0 0.0
    %587 = vmatmul.mubr.f32.gmra.mrb[0].mxu0 %v237
    %v588 = vpop.f32.mrb[0].mxu0
    %v589 = vadd.f32 0.0, %v588
    %v590 = vpop.f32.mrb[0].mxu0
    %591 = vmatprep.mubr.f32.mxu0 0.0
    %592 = vmatmul.mubr.f32.gmra.mrb[0].mxu0 %v240
    %v593 = vpop.f32.mrb[0].mxu0
    %v594 = vadd.f32 0.0, %v593
    %v595 = vpop.f32.mrb[0].mxu0
    %596 = vmatprep.mubr.f32.mxu0 0.0
    %597 = vmatmul.mubr.f32.gmra.mrb[0].mxu0 %v243
    %v598 = vpop.f32.mrb[0].mxu0
    %v599 = vadd.f32 0.0, %v598
    %v600 = vpop.f32.mrb[0].mxu0
    %601 = vmatprep.mubr.f32.mxu0 0.0
    %602 = vmatmul.mubr.f32.gmra.mrb[0].mxu0 %v246
    %v603 = vpop.f32.mrb[0].mxu0
    %v604 = vadd.f32 0.0, %v603
    %v605 = vpop.f32.mrb[0].mxu0
    %606 = vmatprep.mubr.f32.mxu0 0.0
    %607 = vmatmul.mubr.f32.gmra.mrb[0].mxu0 %v249
    %v608 = vpop.f32.mrb[0].mxu0
    %v609 = vadd.f32 0.0, %v608
    %v610 = vpop.f32.mrb[0].mxu0
    %611 = vmatprep.mubr.f32.mxu0 0.0
    %612 = vmatmul.mubr.f32.gmra.mrb[0].mxu0 %v252
    %v613 = vpop.f32.mrb[0].mxu0
    %v614 = vadd.f32 0.0, %v613
    %v615 = vpop.f32.mrb[0].mxu0
    %616 = vmatprep.mubr.f32.mxu0 0.0
    %617 = vmatmul.mubr.f32.gmra.mrb[0].mxu0 %v255
    %v618 = vpop.f32.mrb[0].mxu0
    %v619 = vadd.f32 0.0, %v618
    %v620 = vpop.f32.mrb[0].mxu0
    %621 = vmatprep.mubr.f32.mxu0 0.0
    %622 = vmatmul.mubr.f32.gmra.mrb[0].mxu0 %v258
    %v623 = vpop.f32.mrb[0].mxu0
    %v624 = vadd.f32 0.0, %v623
    %v625 = vpop.f32.mrb[0].mxu0
    %626 = vmatprep.mubr.f32.mxu0 0.0
    %627 = vmatmul.mubr.f32.gmra.mrb[0].mxu0 %v261
    %v628 = vpop.f32.mrb[0].mxu0
    %v629 = vadd.f32 0.0, %v628
    %v630 = vpop.f32.mrb[0].mxu0
    %631 = vmatprep.mubr.f32.mxu0 0.0
    %632 = vmatmul.mubr.f32.gmra.mrb[0].mxu0 %v264
    %v633 = vpop.f32.mrb[0].mxu0
    %v634 = vadd.f32 0.0, %v633
    %v635 = vpop.f32.mrb[0].mxu0
    %636 = vmatprep.mubr.f32.mxu0 0.0
    %637 = vmatmul.mubr.f32.gmra.mrb[0].mxu0 %v267
    %v638 = vpop.f32.mrb[0].mxu0
    %v639 = vadd.f32 0.0, %v638
    %v640 = vpop.f32.mrb[0].mxu0
    %641 = vmatprep.mubr.f32.mxu0 0.0
    %642 = vmatmul.mubr.f32.gmra.mrb[0].mxu0 %v270
    %v643 = vpop.f32.mrb[0].mxu0
    %v644 = vadd.f32 0.0, %v643
    %v645 = vpop.f32.mrb[0].mxu0
    %646 = vmatprep.mubr.f32.mxu0 0.0
    %647 = vmatmul.mubr.f32.gmra.mrb[0].mxu0 %v273
    %v648 = vpop.f32.mrb[0].mxu0
    %v649 = vadd.f32 0.0, %v648
    %v650 = vpop.f32.mrb[0].mxu0
    %651 = vmatprep.mubr.f32.mxu0 0.0
    %652 = vmatmul.mubr.f32.gmra.mrb[0].mxu0 %v276
    %v653 = vpop.f32.mrb[0].mxu0
    %v654 = vadd.f32 0.0, %v653
    %v655 = vpop.f32.mrb[0].mxu0
    %656 = vmatprep.mubr.f32.mxu0 0.0
    %657 = vmatmul.mubr.f32.gmra.mrb[0].mxu0 %v279
    %v658 = vpop.f32.mrb[0].mxu0
    %v659 = vadd.f32 0.0, %v658
    %v660 = vpop.f32.mrb[0].mxu0
    %661 = vmatprep.mubr.f32.mxu0 0.0
    %662 = vmatmul.mubr.f32.gmra.mrb[0].mxu0 %v282
    %v663 = vpop.f32.mrb[0].mxu0
    %v664 = vadd.f32 0.0, %v663
    %v665 = vpop.f32.mrb[0].mxu0
    %666 = vmatprep.mubr.f32.mxu0 0.0
    %667 = vmatmul.mubr.f32.gmra.mrb[0].mxu0 %v285
    %v668 = vpop.f32.mrb[0].mxu0
    %v669 = vadd.f32 0.0, %v668
    %v670 = vpop.f32.mrb[0].mxu0
    %671 = vdwg.mxu0
    %vm672 = vcmp.gt.f32.partialorder %v354, 0.0
    %vm673 = vcmp.gt.f32.partialorder %v359, 0.0
    %vm674 = vcmp.gt.f32.partialorder %v364, 0.0
    %vm675 = vcmp.gt.f32.partialorder %v369, 0.0
    %vm676 = vcmp.gt.f32.partialorder %v374, 0.0
    %vm677 = vcmp.gt.f32.partialorder %v379, 0.0
    %vm678 = vcmp.gt.f32.partialorder %v384, 0.0
    %vm679 = vcmp.gt.f32.partialorder %v389, 0.0
    %vm680 = vcmp.gt.f32.partialorder %v394, 0.0
    %vm681 = vcmp.gt.f32.partialorder %v399, 0.0
    %vm682 = vcmp.gt.f32.partialorder %v404, 0.0
    %vm683 = vcmp.gt.f32.partialorder %v409, 0.0
    %vm684 = vcmp.gt.f32.partialorder %v414, 0.0
    %vm685 = vcmp.gt.f32.partialorder %v419, 0.0
    %vm686 = vcmp.gt.f32.partialorder %v424, 0.0
    %vm687 = vcmp.gt.f32.partialorder %v429, 0.0
    %vm688 = vcmp.gt.f32.partialorder %v434, 0.0
    %vm689 = vcmp.gt.f32.partialorder %v439, 0.0
    %vm690 = vcmp.gt.f32.partialorder %v444, 0.0
    %vm691 = vcmp.gt.f32.partialorder %v449, 0.0
    %vm692 = vcmp.gt.f32.partialorder %v454, 0.0
    %vm693 = vcmp.gt.f32.partialorder %v459, 0.0
    %vm694 = vcmp.gt.f32.partialorder %v464, 0.0
    %vm695 = vcmp.gt.f32.partialorder %v469, 0.0
    %vm696 = vcmp.gt.f32.partialorder %v474, 0.0
    %vm697 = vcmp.gt.f32.partialorder %v479, 0.0
    %vm698 = vcmp.gt.f32.partialorder %v484, 0.0
    %vm699 = vcmp.gt.f32.partialorder %v489, 0.0
    %vm700 = vcmp.gt.f32.partialorder %v494, 0.0
    %vm701 = vcmp.gt.f32.partialorder %v499, 0.0
    %vm702 = vcmp.gt.f32.partialorder %v504, 0.0
    %vm703 = vcmp.gt.f32.partialorder %v509, 0.0
    %vm704 = vcmp.gt.f32.partialorder %v514, 0.0
    %vm705 = vcmp.gt.f32.partialorder %v519, 0.0
    %vm706 = vcmp.gt.f32.partialorder %v524, 0.0
    %vm707 = vcmp.gt.f32.partialorder %v529, 0.0
    %vm708 = vcmp.gt.f32.partialorder %v534, 0.0
    %vm709 = vcmp.gt.f32.partialorder %v539, 0.0
    %vm710 = vcmp.gt.f32.partialorder %v544, 0.0
    %vm711 = vcmp.gt.f32.partialorder %v549, 0.0
    %vm712 = vcmp.gt.f32.partialorder %v554, 0.0
    %vm713 = vcmp.gt.f32.partialorder %v559, 0.0
    %vm714 = vcmp.gt.f32.partialorder %v564, 0.0
    %vm715 = vcmp.gt.f32.partialorder %v569, 0.0
    %vm716 = vcmp.gt.f32.partialorder %v574, 0.0
    %vm717 = vcmp.gt.f32.partialorder %v579, 0.0
    %vm718 = vcmp.gt.f32.partialorder %v584, 0.0
    %vm719 = vcmp.gt.f32.partialorder %v589, 0.0
    %vm720 = vcmp.gt.f32.partialorder %v594, 0.0
    %vm721 = vcmp.gt.f32.partialorder %v599, 0.0
    %vm722 = vcmp.gt.f32.partialorder %v604, 0.0
    %vm723 = vcmp.gt.f32.partialorder %v609, 0.0
    %vm724 = vcmp.gt.f32.partialorder %v614, 0.0
    %vm725 = vcmp.gt.f32.partialorder %v619, 0.0
    %vm726 = vcmp.gt.f32.partialorder %v624, 0.0
    %vm727 = vcmp.gt.f32.partialorder %v629, 0.0
    %vm728 = vcmp.gt.f32.partialorder %v634, 0.0
    %vm729 = vcmp.gt.f32.partialorder %v639, 0.0
    %vm730 = vcmp.gt.f32.partialorder %v644, 0.0
    %vm731 = vcmp.gt.f32.partialorder %v649, 0.0
    %vm732 = vcmp.gt.f32.partialorder %v654, 0.0
    %vm733 = vcmp.gt.f32.partialorder %v659, 0.0
    %vm734 = vcmp.gt.f32.partialorder %v664, 0.0
    %vm735 = vcmp.gt.f32.partialorder %v669, 0.0
    %v736 = vmul.f32 %v354, 0.2
    %v737 = vmul.f32 %v359, 0.2
    %v738 = vmul.f32 %v364, 0.2
    %v739 = vmul.f32 %v369, 0.2
    %v740 = vmul.f32 %v374, 0.2
    %v741 = vmul.f32 %v379, 0.2
    %v742 = vmul.f32 %v384, 0.2
    %v743 = vmul.f32 %v389, 0.2
    %v744 = vmul.f32 %v394, 0.2
    %v745 = vmul.f32 %v399, 0.2
    %v746 = vmul.f32 %v404, 0.2
    %v747 = vmul.f32 %v409, 0.2
    %v748 = vmul.f32 %v414, 0.2
    %v749 = vmul.f32 %v419, 0.2
    %v750 = vmul.f32 %v424, 0.2
    %v751 = vmul.f32 %v429, 0.2
    %v752 = vmul.f32 %v434, 0.2
    %v753 = vmul.f32 %v439, 0.2
    %v754 = vmul.f32 %v444, 0.2
    %v755 = vmul.f32 %v449, 0.2
    %v756 = vmul.f32 %v454, 0.2
    %v757 = vmul.f32 %v459, 0.2
    %v758 = vmul.f32 %v464, 0.2
    %v759 = vmul.f32 %v469, 0.2
    %v760 = vmul.f32 %v474, 0.2
    %v761 = vmul.f32 %v479, 0.2
    %v762 = vmul.f32 %v484, 0.2
    %v763 = vmul.f32 %v489, 0.2
    %v764 = vmul.f32 %v494, 0.2
    %v765 = vmul.f32 %v499, 0.2
    %v766 = vmul.f32 %v504, 0.2
    %v767 = vmul.f32 %v509, 0.2
    %v768 = vmul.f32 %v514, 0.2
    %v769 = vmul.f32 %v519, 0.2
    %v770 = vmul.f32 %v524, 0.2
    %v771 = vmul.f32 %v529, 0.2
    %v772 = vmul.f32 %v534, 0.2
    %v773 = vmul.f32 %v539, 0.2
    %v774 = vmul.f32 %v544, 0.2
    %v775 = vmul.f32 %v549, 0.2
    %v776 = vmul.f32 %v554, 0.2
    %v777 = vmul.f32 %v559, 0.2
    %v778 = vmul.f32 %v564, 0.2
    %v779 = vmul.f32 %v569, 0.2
    %v780 = vmul.f32 %v574, 0.2
    %v781 = vmul.f32 %v579, 0.2
    %v782 = vmul.f32 %v584, 0.2
    %v783 = vmul.f32 %v589, 0.2
    %v784 = vmul.f32 %v594, 0.2
    %v785 = vmul.f32 %v599, 0.2
    %v786 = vmul.f32 %v604, 0.2
    %v787 = vmul.f32 %v609, 0.2
    %v788 = vmul.f32 %v614, 0.2
    %v789 = vmul.f32 %v619, 0.2
    %v790 = vmul.f32 %v624, 0.2
    %v791 = vmul.f32 %v629, 0.2
    %v792 = vmul.f32 %v634, 0.2
    %v793 = vmul.f32 %v639, 0.2
    %v794 = vmul.f32 %v644, 0.2
    %v795 = vmul.f32 %v649, 0.2
    %v796 = vmul.f32 %v654, 0.2
    %v797 = vmul.f32 %v659, 0.2
    %v798 = vmul.f32 %v664, 0.2
    %v799 = vmul.f32 %v669, 0.2
    %v800 = vsel %vm672, %v354, %v736
    %v801 = vsel %vm673, %v359, %v737
    %v802 = vsel %vm674, %v364, %v738
    %v803 = vsel %vm675, %v369, %v739
    %v804 = vsel %vm676, %v374, %v740
    %v805 = vsel %vm677, %v379, %v741
    %v806 = vsel %vm678, %v384, %v742
    %v807 = vsel %vm679, %v389, %v743
    %v808 = vsel %vm680, %v394, %v744
    %v809 = vsel %vm681, %v399, %v745
    %v810 = vsel %vm682, %v404, %v746
    %v811 = vsel %vm683, %v409, %v747
    %v812 = vsel %vm684, %v414, %v748
    %v813 = vsel %vm685, %v419, %v749
    %v814 = vsel %vm686, %v424, %v750
    %v815 = vsel %vm687, %v429, %v751
    %v816 = vsel %vm688, %v434, %v752
    %v817 = vsel %vm689, %v439, %v753
    %v818 = vsel %vm690, %v444, %v754
    %v819 = vsel %vm691, %v449, %v755
    %v820 = vsel %vm692, %v454, %v756
    %v821 = vsel %vm693, %v459, %v757
    %v822 = vsel %vm694, %v464, %v758
    %v823 = vsel %vm695, %v469, %v759
    %v824 = vsel %vm696, %v474, %v760
    %v825 = vsel %vm697, %v479, %v761
    %v826 = vsel %vm698, %v484, %v762
    %v827 = vsel %vm699, %v489, %v763
    %v828 = vsel %vm700, %v494, %v764
    %v829 = vsel %vm701, %v499, %v765
    %v830 = vsel %vm702, %v504, %v766
    %v831 = vsel %vm703, %v509, %v767
    %v832 = vsel %vm704, %v514, %v768
    %v833 = vsel %vm705, %v519, %v769
    %v834 = vsel %vm706, %v524, %v770
    %v835 = vsel %vm707, %v529, %v771
    %v836 = vsel %vm708, %v534, %v772
    %v837 = vsel %vm709, %v539, %v773
    %v838 = vsel %vm710, %v544, %v774
    %v839 = vsel %vm711, %v549, %v775
    %v840 = vsel %vm712, %v554, %v776
    %v841 = vsel %vm713, %v559, %v777
    %v842 = vsel %vm714, %v564, %v778
    %v843 = vsel %vm715, %v569, %v779
    %v844 = vsel %vm716, %v574, %v780
    %v845 = vsel %vm717, %v579, %v781
    %v846 = vsel %vm718, %v584, %v782
    %v847 = vsel %vm719, %v589, %v783
    %v848 = vsel %vm720, %v594, %v784
    %v849 = vsel %vm721, %v599, %v785
    %v850 = vsel %vm722, %v604, %v786
    %v851 = vsel %vm723, %v609, %v787
    %v852 = vsel %vm724, %v614, %v788
    %v853 = vsel %vm725, %v619, %v789
    %v854 = vsel %vm726, %v624, %v790
    %v855 = vsel %vm727, %v629, %v791
    %v856 = vsel %vm728, %v634, %v792
    %v857 = vsel %vm729, %v639, %v793
    %v858 = vsel %vm730, %v644, %v794
    %v859 = vsel %vm731, %v649, %v795
    %v860 = vsel %vm732, %v654, %v796
    %v861 = vsel %vm733, %v659, %v797
    %v862 = vsel %vm734, %v664, %v798
    %v863 = vsel %vm735, %v669, %v799
    %868 = vrot.lane.b32.xlu0 %v804, 16
    %v869 = vpop.permute.xlu0 %868
    %870 = vrot.lane.b32.xlu0 %v805, 16
    %v871 = vpop.permute.xlu0 %870
    %872 = vrot.lane.b32.xlu0 %v806, 16
    %v873 = vpop.permute.xlu0 %872
    %874 = vrot.lane.b32.xlu0 %v807, 16
    %v875 = vpop.permute.xlu0 %874
    %884 = vrot.lane.b32.xlu0 %v808, 32
    %v885 = vpop.permute.xlu0 %884
    %886 = vrot.lane.b32.xlu0 %v809, 32
    %v887 = vpop.permute.xlu0 %886
    %888 = vrot.lane.b32.xlu0 %v810, 32
    %v889 = vpop.permute.xlu0 %888
    %890 = vrot.lane.b32.xlu0 %v811, 32
    %v891 = vpop.permute.xlu0 %890
    %900 = vrot.lane.b32.xlu0 %v812, 48
    %v901 = vpop.permute.xlu0 %900
    %902 = vrot.lane.b32.xlu0 %v813, 48
    %v903 = vpop.permute.xlu0 %902
    %904 = vrot.lane.b32.xlu0 %v814, 48
    %v905 = vpop.permute.xlu0 %904
    %906 = vrot.lane.b32.xlu0 %v815, 48
    %v907 = vpop.permute.xlu0 %906
    %916 = vrot.lane.b32.xlu0 %v816, 64
    %v917 = vpop.permute.xlu0 %916
    %918 = vrot.lane.b32.xlu0 %v817, 64
    %v919 = vpop.permute.xlu0 %918
    %920 = vrot.lane.b32.xlu0 %v818, 64
    %v921 = vpop.permute.xlu0 %920
    %922 = vrot.lane.b32.xlu0 %v819, 64
    %v923 = vpop.permute.xlu0 %922
    %932 = vrot.lane.b32.xlu0 %v820, 80
    %v933 = vpop.permute.xlu0 %932
    %934 = vrot.lane.b32.xlu0 %v821, 80
    %v935 = vpop.permute.xlu0 %934
    %936 = vrot.lane.b32.xlu0 %v822, 80
    %v937 = vpop.permute.xlu0 %936
    %938 = vrot.lane.b32.xlu0 %v823, 80
    %v939 = vpop.permute.xlu0 %938
    %948 = vrot.lane.b32.xlu0 %v824, 96
    %v949 = vpop.permute.xlu0 %948
    %950 = vrot.lane.b32.xlu0 %v825, 96
    %v951 = vpop.permute.xlu0 %950
    %952 = vrot.lane.b32.xlu0 %v826, 96
    %v953 = vpop.permute.xlu0 %952
    %954 = vrot.lane.b32.xlu0 %v827, 96
    %v955 = vpop.permute.xlu0 %954
    %964 = vrot.lane.b32.xlu0 %v828, 112
    %v965 = vpop.permute.xlu0 %964
    %966 = vrot.lane.b32.xlu0 %v829, 112
    %v967 = vpop.permute.xlu0 %966
    %968 = vrot.lane.b32.xlu0 %v830, 112
    %v969 = vpop.permute.xlu0 %968
    %970 = vrot.lane.b32.xlu0 %v831, 112
    %v971 = vpop.permute.xlu0 %970
    %980 = vrot.lane.b32.xlu0 %v836, 16
    %v981 = vpop.permute.xlu0 %980
    %982 = vrot.lane.b32.xlu0 %v837, 16
    %v983 = vpop.permute.xlu0 %982
    %984 = vrot.lane.b32.xlu0 %v838, 16
    %v985 = vpop.permute.xlu0 %984
    %986 = vrot.lane.b32.xlu0 %v839, 16
    %v987 = vpop.permute.xlu0 %986
    %996 = vrot.lane.b32.xlu0 %v840, 32
    %v997 = vpop.permute.xlu0 %996
    %998 = vrot.lane.b32.xlu0 %v841, 32
    %v999 = vpop.permute.xlu0 %998
    %1000 = vrot.lane.b32.xlu0 %v842, 32
    %v1001 = vpop.permute.xlu0 %1000
    %1002 = vrot.lane.b32.xlu0 %v843, 32
    %v1003 = vpop.permute.xlu0 %1002
    %1012 = vrot.lane.b32.xlu0 %v844, 48
    %v1013 = vpop.permute.xlu0 %1012
    %1014 = vrot.lane.b32.xlu0 %v845, 48
    %v1015 = vpop.permute.xlu0 %1014
    %1016 = vrot.lane.b32.xlu0 %v846, 48
    %v1017 = vpop.permute.xlu0 %1016
    %1018 = vrot.lane.b32.xlu0 %v847, 48
    %v1019 = vpop.permute.xlu0 %1018
    %1028 = vrot.lane.b32.xlu0 %v848, 64
    %v1029 = vpop.permute.xlu0 %1028
    %1030 = vrot.lane.b32.xlu0 %v849, 64
    %v1031 = vpop.permute.xlu0 %1030
    %1032 = vrot.lane.b32.xlu0 %v850, 64
    %v1033 = vpop.permute.xlu0 %1032
    %1034 = vrot.lane.b32.xlu0 %v851, 64
    %v1035 = vpop.permute.xlu0 %1034
    %1044 = vrot.lane.b32.xlu0 %v852, 80
    %v1045 = vpop.permute.xlu0 %1044
    %1046 = vrot.lane.b32.xlu0 %v853, 80
    %v1047 = vpop.permute.xlu0 %1046
    %1048 = vrot.lane.b32.xlu0 %v854, 80
    %v1049 = vpop.permute.xlu0 %1048
    %1050 = vrot.lane.b32.xlu0 %v855, 80
    %v1051 = vpop.permute.xlu0 %1050
    %1060 = vrot.lane.b32.xlu0 %v856, 96
    %v1061 = vpop.permute.xlu0 %1060
    %1062 = vrot.lane.b32.xlu0 %v857, 96
    %v1063 = vpop.permute.xlu0 %1062
    %1064 = vrot.lane.b32.xlu0 %v858, 96
    %v1065 = vpop.permute.xlu0 %1064
    %1066 = vrot.lane.b32.xlu0 %v859, 96
    %v1067 = vpop.permute.xlu0 %1066
    %1076 = vrot.lane.b32.xlu0 %v860, 112
    %v1077 = vpop.permute.xlu0 %1076
    %1078 = vrot.lane.b32.xlu0 %v861, 112
    %v1079 = vpop.permute.xlu0 %1078
    %1080 = vrot.lane.b32.xlu0 %v862, 112
    %v1081 = vpop.permute.xlu0 %1080
    %1082 = vrot.lane.b32.xlu0 %v863, 112
    %v1083 = vpop.permute.xlu0 %1082
    %vm1088 = vcmask 130048
    %v1089 = vsel %vm1088, %v800, %v869
    %v1090 = vsel %vm1088, %v801, %v871
    %v1091 = vsel %vm1088, %v802, %v873
    %v1092 = vsel %vm1088, %v803, %v875
    %vm1093 = vcmask 261120
    %v1094 = vsel %vm1093, %v1089, %v885
    %v1095 = vsel %vm1093, %v1090, %v887
    %v1096 = vsel %vm1093, %v1091, %v889
    %v1097 = vsel %vm1093, %v1092, %v891
    %v1098 = vsel %vm94, %v1094, %v901
    %v1099 = vsel %vm94, %v1095, %v903
    %v1100 = vsel %vm94, %v1096, %v905
    %v1101 = vsel %vm94, %v1097, %v907
    %vm1102 = vcmask 523264
    %v1103 = vsel %vm1102, %v1098, %v917
    %v1104 = vsel %vm1102, %v1099, %v919
    %v1105 = vsel %vm1102, %v1100, %v921
    %v1106 = vsel %vm1102, %v1101, %v923
    %vm1107 = vcmask 654336
    %v1108 = vsel %vm1107, %v1103, %v933
    %v1109 = vsel %vm1107, %v1104, %v935
    %v1110 = vsel %vm1107, %v1105, %v937
    %v1111 = vsel %vm1107, %v1106, %v939
    %vm1112 = vcmask 785408
    %v1113 = vsel %vm1112, %v1108, %v949
    %v1114 = vsel %vm1112, %v1109, %v951
    %v1115 = vsel %vm1112, %v1110, %v953
    %v1116 = vsel %vm1112, %v1111, %v955
    %vm1117 = vcmask 916480
    %v1118 = vsel %vm1117, %v1113, %v965
    %v1119 = vsel %vm1117, %v1114, %v967
    %v1120 = vsel %vm1117, %v1115, %v969
    %v1121 = vsel %vm1117, %v1116, %v971
    %v1122 = vsel %vm1088, %v832, %v981
    %v1123 = vsel %vm1088, %v833, %v983
    %v1124 = vsel %vm1088, %v834, %v985
    %v1125 = vsel %vm1088, %v835, %v987
    %v1126 = vsel %vm1093, %v1122, %v997
    %v1127 = vsel %vm1093, %v1123, %v999
    %v1128 = vsel %vm1093, %v1124, %v1001
    %v1129 = vsel %vm1093, %v1125, %v1003
    %v1130 = vsel %vm94, %v1126, %v1013
    %v1131 = vsel %vm94, %v1127, %v1015
    %v1132 = vsel %vm94, %v1128, %v1017
    %v1133 = vsel %vm94, %v1129, %v1019
    %v1134 = vsel %vm1102, %v1130, %v1029
    %v1135 = vsel %vm1102, %v1131, %v1031
    %v1136 = vsel %vm1102, %v1132, %v1033
    %v1137 = vsel %vm1102, %v1133, %v1035
    %v1138 = vsel %vm1107, %v1134, %v1045
    %v1139 = vsel %vm1107, %v1135, %v1047
    %v1140 = vsel %vm1107, %v1136, %v1049
    %v1141 = vsel %vm1107, %v1137, %v1051
    %v1142 = vsel %vm1112, %v1138, %v1061
    %v1143 = vsel %vm1112, %v1139, %v1063
    %v1144 = vsel %vm1112, %v1140, %v1065
    %v1145 = vsel %vm1112, %v1141, %v1067
    %v1146 = vsel %vm1117, %v1142, %v1077
    %v1147 = vsel %vm1117, %v1143, %v1079
    %v1148 = vsel %vm1117, %v1144, %v1081
    %v1149 = vsel %vm1117, %v1145, %v1083
    %v1150 = vld [vmem:[%s2] sm:$0xff]
    %v1151 = vld [vmem:[%s2 + $0x8] sm:$0xff]
    %v1152 = vld [vmem:[%s2 + $0x10] sm:$0xff]
    %v1153 = vld [vmem:[%s2 + $0x18] sm:$0xff]
    %v1154 = vld [vmem:[%s2 + $0x20] sm:$0xff]
    %v1155 = vld [vmem:[%s2 + $0x28] sm:$0xff]
    %v1156 = vld [vmem:[%s2 + $0x30] sm:$0xff]
    %v1157 = vld [vmem:[%s2 + $0x38] sm:$0xff]
    %v1158 = vld [vmem:[%s2 + $0x40] sm:$0xff]
    %v1159 = vld [vmem:[%s2 + $0x48] sm:$0xff]
    %v1160 = vld [vmem:[%s2 + $0x50] sm:$0xff]
    %v1161 = vld [vmem:[%s2 + $0x58] sm:$0xff]
    %v1162 = vld [vmem:[%s2 + $0x60] sm:$0xff]
    %v1163 = vld [vmem:[%s2 + $0x68] sm:$0xff]
    %v1164 = vld [vmem:[%s2 + $0x70] sm:$0xff]
    %v1165 = vld [vmem:[%s2 + $0x78] sm:$0xff]
    %v1166 = vld [vmem:[%s2 + $0x80] sm:$0xff]
    %v1167 = vld [vmem:[%s2 + $0x88] sm:$0xff]
    %v1168 = vld [vmem:[%s2 + $0x90] sm:$0xff]
    %v1169 = vld [vmem:[%s2 + $0x98] sm:$0xff]
    %v1170 = vld [vmem:[%s2 + $0xa0] sm:$0xff]
    %v1171 = vld [vmem:[%s2 + $0xa8] sm:$0xff]
    %v1172 = vld [vmem:[%s2 + $0xb0] sm:$0xff]
    %v1173 = vld [vmem:[%s2 + $0xb8] sm:$0xff]
    %v1174 = vld [vmem:[%s2 + $0xc0] sm:$0xff]
    %v1175 = vld [vmem:[%s2 + $0xc8] sm:$0xff]
    %v1176 = vld [vmem:[%s2 + $0xd0] sm:$0xff]
    %v1177 = vld [vmem:[%s2 + $0xd8] sm:$0xff]
    %v1178 = vld [vmem:[%s2 + $0xe0] sm:$0xff]
    %v1179 = vld [vmem:[%s2 + $0xe8] sm:$0xff]
    %v1180 = vld [vmem:[%s2 + $0xf0] sm:$0xff]
    %v1181 = vld [vmem:[%s2 + $0xf8] sm:$0xff]
    %1182 = vmatprep.subr.mxu0 0.0
    %1183 = vmatpush1.msra.mxu0 %v1150
    %1184 = vmatprep.subr.mxu0 0.0
    %1185 = vmatpush1.msra.mxu0 %v1151
    %1186 = vmatprep.subr.mxu0 0.0
    %1187 = vmatpush1.msra.mxu0 %v1152
    %1188 = vmatprep.subr.mxu0 0.0
    %1189 = vmatpush1.msra.mxu0 %v1153
    %1190 = vmatprep.subr.mxu0 0.0
    %1191 = vmatpush1.msra.mxu0 %v1154
    %1192 = vmatprep.subr.mxu0 0.0
    %1193 = vmatpush1.msra.mxu0 %v1155
    %1194 = vmatprep.subr.mxu0 0.0
    %1195 = vmatpush1.msra.mxu0 %v1156
    %1196 = vmatprep.subr.mxu0 0.0
    %1197 = vmatpush1.msra.mxu0 %v1157
    %1198 = vmatprep.subr.mxu0 0.0
    %1199 = vmatpush1.msra.mxu0 %v1158
    %1200 = vmatprep.subr.mxu0 0.0
    %1201 = vmatpush1.msra.mxu0 %v1159
    %1202 = vmatprep.subr.mxu0 0.0
    %1203 = vmatpush1.msra.mxu0 %v1160
    %1204 = vmatprep.subr.mxu0 0.0
    %1205 = vmatpush1.msra.mxu0 %v1161
    %1206 = vmatprep.subr.mxu0 0.0
    %1207 = vmatpush1.msra.mxu0 %v1162
    %1208 = vmatprep.subr.mxu0 0.0
    %1209 = vmatpush1.msra.mxu0 %v1163
    %1210 = vmatprep.subr.mxu0 0.0
    %1211 = vmatpush1.msra.mxu0 %v1164
    %1212 = vmatprep.subr.mxu0 0.0
    %1213 = vmatpush1.msra.mxu0 %v1165
    %1214 = vmatprep.subr.mxu0 0.0
    %1215 = vmatpush1.msra.mxu0 %v1166
    %1216 = vmatprep.subr.mxu0 0.0
    %1217 = vmatpush1.msra.mxu0 %v1167
    %1218 = vmatprep.subr.mxu0 0.0
    %1219 = vmatpush1.msra.mxu0 %v1168
    %1220 = vmatprep.subr.mxu0 0.0
    %1221 = vmatpush1.msra.mxu0 %v1169
    %1222 = vmatprep.subr.mxu0 0.0
    %1223 = vmatpush1.msra.mxu0 %v1170
    %1224 = vmatprep.subr.mxu0 0.0
    %1225 = vmatpush1.msra.mxu0 %v1171
    %1226 = vmatprep.subr.mxu0 0.0
    %1227 = vmatpush1.msra.mxu0 %v1172
    %1228 = vmatprep.subr.mxu0 0.0
    %1229 = vmatpush1.msra.mxu0 %v1173
    %1230 = vmatprep.subr.mxu0 0.0
    %1231 = vmatpush1.msra.mxu0 %v1174
    %1232 = vmatprep.subr.mxu0 0.0
    %1233 = vmatpush1.msra.mxu0 %v1175
    %1234 = vmatprep.subr.mxu0 0.0
    %1235 = vmatpush1.msra.mxu0 %v1176
    %1236 = vmatprep.subr.mxu0 0.0
    %1237 = vmatpush1.msra.mxu0 %v1177
    %1238 = vmatprep.subr.mxu0 0.0
    %1239 = vmatpush1.msra.mxu0 %v1178
    %1240 = vmatprep.subr.mxu0 0.0
    %1241 = vmatpush1.msra.mxu0 %v1179
    %1242 = vmatprep.subr.mxu0 0.0
    %1243 = vmatpush1.msra.mxu0 %v1180
    %1244 = vmatprep.subr.mxu0 0.0
    %1245 = vmatpush1.msra.mxu0 %v1181
    %1246 = vmatprep.mubr.f32.mxu0 %v1146
    %1247 = vmatmul.mubr.f32.gmra.mrb[0].mxu0 %v1118
    %v1248 = vpop.f32.mrb[0].mxu0
    %v1249 = vadd.f32 0.0, %v1248
    %v1250 = vpop.f32.mrb[0].mxu0
    %1251 = vmatprep.mubr.f32.mxu0 %v1147
    %1252 = vmatmul.mubr.f32.gmra.mrb[0].mxu0 %v1119
    %v1253 = vpop.f32.mrb[0].mxu0
    %v1254 = vadd.f32 0.0, %v1253
    %v1255 = vpop.f32.mrb[0].mxu0
    %1256 = vmatprep.mubr.f32.mxu0 %v1148
    %1257 = vmatmul.mubr.f32.gmra.mrb[0].mxu0 %v1120
    %v1258 = vpop.f32.mrb[0].mxu0
    %v1259 = vadd.f32 0.0, %v1258
    %v1260 = vpop.f32.mrb[0].mxu0
    %1261 = vmatprep.mubr.f32.mxu0 %v1149
    %1262 = vmatmul.mubr.f32.gmra.mrb[0].mxu0 %v1121
    %v1263 = vpop.f32.mrb[0].mxu0
    %v1264 = vadd.f32 0.0, %v1263
    %v1265 = vpop.f32.mrb[0].mxu0
    %1266 = vdwg.mxu0
    %v1267 = vsel %vm1093, %v1249, 0.0
    %v1268 = vsel %vm1093, %v1254, 0.0
    %v1269 = vadd.f32 %v1267, %v1268
    %v1270 = vsel %vm1093, %v1259, 0.0
    %v1271 = vadd.f32 %v1269, %v1270
    %v1272 = vsel %vm1093, %v1264, 0.0
    %v1273 = vadd.f32 %v1271, %v1272
    %v1274 = vrot.slane %v1273, 4
    %v1275 = vadd.f32 %v1273, %v1274
    %v1276 = vrot.slane %v1275, 2
    %v1277 = vadd.f32 %v1275, %v1276
    %v1278 = vrot.slane %v1277, 1
    %v1279 = vadd.f32 %v1277, %v1278
    %v1280 = vrcp.pop 32.0
    %v1281 = vmul.f32 %v1279, %v1280
    %v1282 = vsub.f32 %v1249, %v1281
    %v1283 = vsub.f32 %v1254, %v1281
    %v1284 = vsub.f32 %v1259, %v1281
    %v1285 = vsub.f32 %v1264, %v1281
    %v1286 = vmul.f32 %v1282, %v1282
    %v1287 = vmul.f32 %v1283, %v1283
    %v1288 = vmul.f32 %v1284, %v1284
    %v1289 = vmul.f32 %v1285, %v1285
    %v1290 = vsel %vm1093, %v1286, 0.0
    %v1291 = vsel %vm1093, %v1287, 0.0
    %v1292 = vadd.f32 %v1290, %v1291
    %v1293 = vsel %vm1093, %v1288, 0.0
    %v1294 = vadd.f32 %v1292, %v1293
    %v1295 = vsel %vm1093, %v1289, 0.0
    %v1296 = vadd.f32 %v1294, %v1295
    %v1297 = vrot.slane %v1296, 4
    %v1298 = vadd.f32 %v1296, %v1297
    %v1299 = vrot.slane %v1298, 2
    %v1300 = vadd.f32 %v1298, %v1299
    %v1301 = vrot.slane %v1300, 1
    %v1302 = vadd.f32 %v1300, %v1301
    %v1303 = vmul.f32 %v1302, %v1280
    %v1304 = vadd.f32 %v1303, 1e-05
    %v1305 = vrsqrt.pop %v1304
    %v1306 = vmul.f32 %v1282, %v1305
    %v1307 = vmul.f32 %v1283, %v1305
    %v1308 = vmul.f32 %v1284, %v1305
    %v1309 = vmul.f32 %v1285, %v1305
    %v1310 = vld [vmem:[%s3] sm:$0x1]
    %v1312 = vlaneseq
    %v1313 = vshrl.u32 %v1312, 7
    %v1314 = vsub.s32 0, %v1313
    %v1315 = vrot.slane %v1310, %v1314
    %v1317 = vmul.f32 %v1306, %v1315
    %v1318 = vmul.f32 %v1307, %v1315
    %v1319 = vmul.f32 %v1308, %v1315
    %v1320 = vmul.f32 %v1309, %v1315
    %v1321 = vld [vmem:[%s4] sm:$0x1]
    %v1323 = vlaneseq
    %v1324 = vshrl.u32 %v1323, 7
    %v1325 = vsub.s32 0, %v1324
    %v1326 = vrot.slane %v1321, %v1325
    %v1328 = vadd.f32 %v1317, %v1326
    %v1329 = vadd.f32 %v1318, %v1326
    %v1330 = vadd.f32 %v1319, %v1326
    %v1331 = vadd.f32 %v1320, %v1326
    %vm1332 = vcmp.gt.f32.partialorder %v1328, 0.0
    %vm1333 = vcmp.gt.f32.partialorder %v1329, 0.0
    %vm1334 = vcmp.gt.f32.partialorder %v1330, 0.0
    %vm1335 = vcmp.gt.f32.partialorder %v1331, 0.0
    %v1336 = vmul.f32 %v1328, 0.2
    %v1337 = vmul.f32 %v1329, 0.2
    %v1338 = vmul.f32 %v1330, 0.2
    %v1339 = vmul.f32 %v1331, 0.2
    %v1340 = vsel %vm1332, %v1328, %v1336
    %v1341 = vsel %vm1333, %v1329, %v1337
    %v1342 = vsel %vm1334, %v1330, %v1338
    %v1343 = vsel %vm1335, %v1331, %v1339
    %v1344 = vadd.f32 %v1340, %v1342
    %v1345 = vadd.f32 %v1341, %v1343
    %v1346 = vld [vmem:[%s5] sm:$0xff]
    %v1347 = vld [vmem:[%s5 + $0x8] sm:$0xff]
    %v1348 = vmul.f32 %v1344, %v1346
    %v1349 = vmul.f32 %v1345, %v1347
    %v1350 = vsel %vm1093, %v1348, 0.0
    %v1351 = vsel %vm1093, %v1349, 0.0
    %v1352 = vadd.f32 %v1350, %v1351
    %1353 = vadd.xlane.f32.xlu0 %v1352
    %v1354 = vpop.xlane.xlu0 %1353
    %v1355 = vrot.slane %v1354, 4
    %v1356 = vadd.f32 %v1354, %v1355
    %v1357 = vrot.slane %v1356, 2
    %v1358 = vadd.f32 %v1356, %v1357
    %v1359 = vrot.slane %v1358, 1
    %v1360 = vadd.f32 %v1358, %v1359
    %s1361 = vtos %v1360
    %v1362 = vstv %s1361
    %v1363 = vmul.f32 %v1362, 0.5
    %vm1364 = vcmask 0
    %1365 = vst.msk [vmem:[#allocation2] sm:$0x1] %vm1364, %v1363
    // Predicated region
    $region26: #{dcgan_d_forward.1} parent=1 // pred_check
      _
    $region27: #{dcgan_d_forward.1} parent=1 // pred_check_branch
      %1367 = sbr.rel (0) target = $region29
    $region28: #{dcgan_d_forward.1} parent=1 // pred_region
      %s1369 = ssub.s32 16, 16
      %1370 = vsyncadd [#allocation3], %s1369
      %s1372 = sshll.u32 [#allocation2], 4
      %s1373 = int_to_ptr.vmem [resolvable:$true] %s1372
      %1375 = dma.vmem_to_hbm [thread:$0]  %s1373, 16, %s6, [#allocation3]
    $region29: #{dcgan_d_forward.1} parent=1 // pred_fallthru
      _
    // Predicated region
    $region30: #{dcgan_d_forward.1} parent=1 // pred_check
      _
    $region31: #{dcgan_d_forward.1} parent=1 // pred_check_branch
      %1377 = sbr.rel (0) target = $region33
    $region32: #{dcgan_d_forward.1} parent=1 // pred_region
      %1378 = dma.done [#allocation3], 16
    $region33: #{dcgan_d_forward.1} parent=1 // pred_fallthru
      _
    %1379 = vsyncpa [#allocation3], 1

</llo_original>
